<compile_context>
chip_gen: v6e
topology: v6e:2x2x1
jax: 0.10.0
libtpu: 0.0.40
codegen_flags: <defaults>
</compile_context>

<pallas_src>
import functools

import jax
import jax.numpy as jnp
from jax.experimental import pallas as pl
from jax.experimental.pallas import tpu as pltpu


# Per-step input-block budget (double-buffered ~16 MiB). Safe on all of
# v5e/v6e/v7x because vmem_limit_bytes is set explicitly below.
_BUDGET_BYTES = 8 * 1024 * 1024


def _mean_single_kernel(x_ref, o_ref, *, inv_c):
    """Whole C in one block: reduce and write directly (no accumulator)."""
    s = jnp.sum(x_ref[...], axis=1, keepdims=True, dtype=jnp.float32)
    o_ref[...] = (s * inv_c).astype(o_ref.dtype)


def _mean_acc_kernel(x_ref, o_ref, acc_ref, *, inv_c, sub):
    """C split across grid axis 2; `sub`-row f32 resident accumulator."""
    k = pl.program_id(2)

    @pl.when(k == 0)
    def _():
        acc_ref[...] = jnp.zeros_like(acc_ref)

    n_t, c_t, hw_t = x_ref.shape
    # Sublane-aligned split of the channel axis: per-step work is pure VPU
    # vreg adds into the `sub`-row accumulator (no per-step XLU reduce).
    x = x_ref[...].reshape(n_t, c_t // sub, sub, hw_t)
    acc_ref[...] += jnp.sum(x, axis=1, dtype=jnp.float32)

    @pl.when(k == pl.num_programs(2) - 1)
    def _():
        o_ref[...] = (
            jnp.sum(acc_ref[...], axis=1, keepdims=True) * inv_c
        ).astype(o_ref.dtype)


def _largest_aligned_divisor(dim, unit, cap):
    """Largest d with d % unit == 0, dim % d == 0, d <= min(dim, cap); else None."""
    cap = min(dim, cap)
    best = None
    d = unit
    while d <= cap:
        if dim % d == 0:
            best = d
        d += unit
    return best


def _largest_divisor(dim, cap):
    """Largest divisor of `dim` that is <= cap (always >= 1)."""
    cap = max(1, min(dim, cap))
    for d in range(cap, 0, -1):
        if dim % d == 0:
            return d
    return 1


def mean_proxy(x):
    """Equivalent of MeanProxy.forward: mean over dim=1 (NCHW -> NHW)."""
    n, c, h, w = x.shape
    hw = h * w
    itemsize = jnp.dtype(x.dtype).itemsize
    # Dtype-aware minimum sublane tile: 8 for 32-bit, 16 for 16-bit, 32 for 8-bit.
    sub = {4: 8, 2: 16, 1: 32}.get(itemsize, 8)

    # Lane-dense last dim: pad HW up to a multiple of 128 if needed. Padded
    # zeros just add zeros under the C-sum and are sliced off afterwards.
    hw_pad = -(-hw // 128) * 128
    x2 = x.reshape(n, c, hw)
    if hw_pad != hw:
        x2 = jnp.pad(x2, ((0, 0), (0, 0), (0, hw_pad - hw)))

    budget_elems = max(1, _BUDGET_BYTES // itemsize)

    if c * 128 <= budget_elems:
        # Whole channel axis in a single reduction step.
        c_tile = c
        hw_tile = _largest_aligned_divisor(hw_pad, 128, budget_elems // c) or 128
        n_tile = _largest_divisor(n, budget_elems // (c * hw_tile))
    else:
        # C must be split across grid steps; keep a moderate lane tile.
        n_tile = 1
        hw_tile = _largest_aligned_divisor(
            hw_pad, 128, min(2048, max(128, budget_elems // sub))
        ) or 128
        c_tile = _largest_aligned_divisor(c, sub, budget_elems // hw_tile)
        if c_tile is None:
            # No sublane-aligned divisor of C: take full C (always legal) and
            # shrink the lane tile so the block stays near the budget.
            c_tile = c
            hw_tile = _largest_aligned_divisor(
                hw_pad, 128, max(128, budget_elems // c)
            ) or 128

    # Give the parallel (N, HW) axes at least 2 grid points when cheap, so
    # both v7x TensorCores get work on this mem-bound reduction.
    if (n // n_tile) * (hw_pad // hw_tile) == 1 and hw_pad >= 256:
        hw_tile = _largest_aligned_divisor(hw_pad, 128, hw_pad // 2) or hw_tile

    num_k = c // c_tile
    grid = (n // n_tile, hw_pad // hw_tile, num_k)
    inv_c = 1.0 / float(c)

    in_spec = pl.BlockSpec((n_tile, c_tile, hw_tile), lambda b, s, k: (b, k, s))
    out_spec = pl.BlockSpec((n_tile, 1, hw_tile), lambda b, s, k: (b, 0, s))

    if num_k == 1:
        kernel = functools.partial(_mean_single_kernel, inv_c=inv_c)
        scratch = []
        scratch_bytes = 0
    else:
        kernel = functools.partial(_mean_acc_kernel, inv_c=inv_c, sub=sub)
        scratch = [pltpu.VMEM((n_tile, sub, hw_tile), jnp.float32)]
        scratch_bytes = n_tile * sub * hw_tile * 4

    # Explicit scoped-VMEM limit: covers the double-buffered input/output
    # blocks + scratch with headroom (v5e's 16 MiB default is too small for
    # the bumped budget; 32+ MiB is safe on all generations).
    block_in = n_tile * c_tile * hw_tile * itemsize
    block_out = n_tile * 1 * hw_tile * itemsize
    vmem_limit = max(
        32 * 1024 * 1024,
        int(1.25 * (2 * block_in + 2 * block_out + scratch_bytes)) + (2 << 20),
    )

    out3 = pl.pallas_call(
        kernel,
        out_shape=jax.ShapeDtypeStruct((n, 1, hw_pad), x.dtype),
        grid_spec=pltpu.PrefetchScalarGridSpec(
            num_scalar_prefetch=0,
            grid=grid,
            in_specs=[in_spec],
            out_specs=out_spec,
            scratch_shapes=scratch,
        ),
        compiler_params=pltpu.CompilerParams(
            dimension_semantics=("parallel", "parallel", "arbitrary"),
            vmem_limit_bytes=vmem_limit,
        ),
    )(x2)

    return out3[:, 0, :hw].reshape(n, h, w)


if __name__ == "__main__":
    key = jax.random.PRNGKey(0)
    # Small NCHW input consistent with the module's forward.
    x = jax.random.normal(key, (2, 4, 16, 16), dtype=jnp.float32)

    out = mean_proxy(x)
    out = jax.block_until_ready(out)

    # Sanity-check against plain JAX reference.
    ref = jnp.mean(x, axis=1)
    assert out.shape == (2, 16, 16), out.shape
    assert jnp.allclose(out, ref, atol=1e-5, rtol=1e-5), "mismatch vs reference"

    print("KERNEL_OK")
</pallas_src>

<mosaic_0001>
module attributes {stable_mosaic.version = 11 : i64} {
  func.func @_mean_single_kernel(%arg0: i32, %arg1: i32, %arg2: i32, %arg3: memref<2x4x128xf32, #tpu.memory_space<vmem>>, %arg4: memref<2x1x128xf32, #tpu.memory_space<vmem>>) attributes {dimension_semantics = [#tpu.dimension_semantics<parallel>, #tpu.dimension_semantics<parallel>, #tpu.dimension_semantics<arbitrary>], iteration_bounds = array<i64: 1, 2, 1>, scalar_prefetch = 0 : i64, scratch_operands = 0 : i64, tpu.core_type = #tpu.core_type<tc>, window_params = [{transform_indices = @transform_0, window_bounds = array<i64: 2, 4, 128>}, {transform_indices = @transform_1, window_bounds = array<i64: 2, 1, 128>}]} {
    %c0 = arith.constant 0 : index
    %c0_0 = arith.constant 0 : index
    %c0_1 = arith.constant 0 : index
    %0 = vector.load %arg3[%c0, %c0_0, %c0_1] : memref<2x4x128xf32, #tpu.memory_space<vmem>>, vector<2x4x128xf32>
    %cst = arith.constant dense<0.000000e+00> : vector<2x128xf32>
    %1 = vector.multi_reduction <add>, %0, %cst [1] : vector<2x4x128xf32> to vector<2x128xf32>
    %2 = vector.shape_cast %1 : vector<2x128xf32> to vector<2x1x128xf32>
    %cst_2 = arith.constant 2.500000e-01 : f32
    %3 = vector.broadcast %cst_2 : f32 to vector<2x1x128xf32>
    %4 = arith.mulf %2, %3 : vector<2x1x128xf32>
    %c0_3 = arith.constant 0 : index
    %c0_4 = arith.constant 0 : index
    %c0_5 = arith.constant 0 : index
    %5 = vector.load %arg4[%c0_3, %c0_4, %c0_5] : memref<2x1x128xf32, #tpu.memory_space<vmem>>, vector<2x1x128xf32>
    tpu.vector_store %arg4[%c0_3, %c0_4, %c0_5], %4 {strides = array<i32>} : memref<2x1x128xf32, #tpu.memory_space<vmem>>, vector<2x1x128xf32>,
    return
  }
  func.func @transform_0(%arg0: i32, %arg1: i32, %arg2: i32) -> (i32, i32, i32) {
    %c0_i32 = arith.constant 0 : i32
    return %arg0, %arg2, %arg1 : i32, i32, i32
  }
  func.func @transform_1(%arg0: i32, %arg1: i32, %arg2: i32) -> (i32, i32, i32) {
    %c0_i32 = arith.constant 0 : i32
    %c0_i32_0 = arith.constant 0 : i32
    return %arg0, %c0_i32, %arg1 : i32, i32, i32
  }
}

</mosaic_0001>

<llo_original>
// kernel: tpu_custom_call.1
$region0: #{tpu_custom_call.1}
  #allocation0 [shape = 'u32[]', space=smem, size = 0x4, offset = 0x4, fixed_abs, tag = 'smem constant byte address 0x4 - core index']
  #allocation1 [shape = 'u32[144,128]{1,0:T(1,128)}', space=vmem, size = 0x12000, scoped, tag = 'internal scratch']
  %s0 = inlined_call_operand.hbm [shape: f32[2,4,256], index: 0, kind: input, shape index: {}]
  %s1 = inlined_call_operand.hbm [shape: f32[2,1,256], index: 1, kind: output, shape index: {}]
  %s2 = sld [smem:[#allocation0]]
  $region41: #{tpu_custom_call.1} parent=0
    _
  %s4 = ssub.s32 1, %s2
  %s5 = scalar_select 0, %s4, %s2
  $region1: #{tpu_custom_call.1} parent=0
    #allocation2 [shape = 'u8[8192]{0}', space=vmem, size = 0x2000, scoped, tag = 'input window, operand 0']
    #allocation3 [shape = 's32[2]{0}', space=sflag, size = 0x8, scoped, tag = 'scoped memory for tpu_custom_call.1']
    #allocation4 [shape = 's32[2]{0}', space=sflag, size = 0x8, scoped, tag = 'scoped memory for tpu_custom_call.1']
    #allocation5 [shape = 'u8[2048]{0}', space=vmem, size = 0x800, scoped, tag = 'output window, operand 0']
    %6 = vsyncpa [#allocation3], 0
    %s7 = scalar_lea.sflag [#allocation3], 1
    %8 = vsyncpa %s7, 0
    %9 = vsyncpa [#allocation4], 0
    %s10 = scalar_lea.sflag [#allocation4], 1
    %11 = vsyncpa %s10, 0
    loop: start=0, step=1, limit=4
    $region2: #{tpu_custom_call.1} parent=1 // loop_pre_header
      _
    $region3: #{tpu_custom_call.1} parent=1 // loop_header
      %s13 = sphi 0, %s17
      %p14 = scmp.ge.s32.totalorder %s13, 4
      %s20 = sphi 0, %s39
      %s21 = sphi 0, %s35
      %s22 = sphi 0, %s31
      %s23 = sphi 0, %s20
      %s24 = sphi 0, %s21
      %s25 = sphi 0, %s22
      %s26 = sphi 0, %s23
      %s27 = sphi 0, %s24
      %s28 = sphi 0, %s25
      %s46 = sphi 0, %s48
      %s49 = sphi 0, %s46
      %s50 = sphi 0, %s49
      %s66 = sphi 0, %s50
      %s74 = sphi 0, %s76
      %s77 = sphi 0, %s74
      %s78 = sphi 0, %s77
      %s94 = sphi 0, %s78
    $region4: #{tpu_custom_call.1} parent=1 // loop_header_branch
      %16 = sbr.rel (%p14) target = $region8
    $region5: #{tpu_custom_call.1} parent=1 // loop_body
      %s18 = ssub.s32 %s13, 1
      %s19 = ssub.s32 %s13, 2
      %s29 = sadd.s32 1, %s22
      %p30 = scmp.ge.s32.totalorder %s29, 1
      %s31 = scalar_select %p30, 0, %s29
      %s32 = sadd.s32 1, %s21
      %s33 = scalar_select %p30, %s32, %s21
      %p34 = scmp.ge.s32.totalorder %s33, 2
      %s35 = scalar_select %p34, 0, %s33
      %s36 = sadd.s32 1, %s20
      %s37 = scalar_select %p34, %s36, %s20
      %p38 = scmp.ge.s32.totalorder %s37, 1
      %s39 = scalar_select %p38, 0, %s37
      %s40 = ssub.s32 %s20, %s39
      %s41 = ssub.s32 %s22, %s31
      %s42 = sor.u32 %s40, %s41
      %s43 = ssub.s32 %s21, %s35
      %s44 = sor.u32 %s42, %s43
      %p45 = scmp.eq.s32.totalorder %s44, 0
      %s47 = sadd.s32 %s46, 1
      %s48 = scalar_select %p45, %s46, %s47
      %p51 = pneg %p45
      %p52 = scmp.eq.s32.totalorder %s13, 1
      %p53 = por %p51, %p52
      %p54 = scmp.ne.s32.totalorder %s46, %s49
      %p55 = scmp.eq.s32.totalorder %s13, 0
      %p56 = por %p54, %p55
      %p57 = scmp.ne.s32.totalorder %s46, %s49
      %p58 = scmp.eq.s32.totalorder %s18, 1
      %p59 = por %p57, %p58
      %p60 = scmp.ne.s32.totalorder %s49, %s50
      %p61 = scmp.eq.s32.totalorder %s18, 0
      %p62 = por %p60, %p61
      %p63 = scmp.ne.s32.totalorder %s49, %s50
      %p64 = scmp.eq.s32.totalorder %s19, 1
      %p65 = por %p63, %p64
      %p67 = scmp.ne.s32.totalorder %s50, %s66
      %p68 = scmp.eq.s32.totalorder %s19, 0
      %p69 = por %p67, %p68
      %s70 = ssub.s32 %s20, %s39
      %s71 = ssub.s32 %s21, %s35
      %s72 = sor.u32 %s70, %s71
      %p73 = scmp.eq.s32.totalorder %s72, 0
      %s75 = sadd.s32 %s74, 1
      %s76 = scalar_select %p73, %s74, %s75
      %p79 = pneg %p73
      %p80 = scmp.eq.s32.totalorder %s13, 1
      %p81 = por %p79, %p80
      %p82 = scmp.ne.s32.totalorder %s74, %s77
      %p83 = scmp.eq.s32.totalorder %s13, 0
      %p84 = por %p82, %p83
      %p85 = scmp.ne.s32.totalorder %s74, %s77
      %p86 = scmp.eq.s32.totalorder %s18, 1
      %p87 = por %p85, %p86
      %p88 = scmp.ne.s32.totalorder %s77, %s78
      %p89 = scmp.eq.s32.totalorder %s18, 0
      %p90 = por %p88, %p89
      %p91 = scmp.ne.s32.totalorder %s77, %s78
      %p92 = scmp.eq.s32.totalorder %s19, 1
      %p93 = por %p91, %p92
      %p95 = scmp.ne.s32.totalorder %s78, %s94
      %p96 = scmp.eq.s32.totalorder %s19, 0
      %p97 = por %p95, %p96
      %p98 = scmp.le.s32.totalorder 1, %s13
      %p99 = scmp.lt.s32.totalorder %s13, 3
      %p100 = pnand %p98, %p99
      %p101 = pneg %p100
      // Predicated region
      $region9: #{tpu_custom_call.1} parent=5 // pred_check
        _
      $region10: #{tpu_custom_call.1} parent=5 // pred_check_branch
        %103 = sbr.rel (%p100) target = $region12
      $region11: #{tpu_custom_call.1} parent=5 // pred_region
        %s104 = ssub.s32 %s13, 1
      $region12: #{tpu_custom_call.1} parent=5 // pred_fallthru
        _
      %p105 = scmp.lt.s32.totalorder %s13, 2
      // Predicated region
      $region13: #{tpu_custom_call.1} parent=5 // pred_check
        %p106 = pneg %p105
      $region14: #{tpu_custom_call.1} parent=5 // pred_check_branch
        %108 = sbr.rel (%p106) target = $region16
      $region15: #{tpu_custom_call.1} parent=5 // pred_region
        // Predicated region
        $region17: #{tpu_custom_call.1} parent=15 // pred_check
          %p109 = pneg %p56
        $region18: #{tpu_custom_call.1} parent=15 // pred_check_branch
          %111 = sbr.rel (%p109) target = $region20
        $region19: #{tpu_custom_call.1} parent=15 // pred_region
          %s112 = sand.u32 %s46, 1
          %s113 = scalar_lea.sflag [#allocation3], %s112
          %s114 = sand.u32 %s46, 1
          %s115 = smul.addr %s114, 8
          %s116 = scalar_lea.vmem [#allocation2], %s115
          %s117 = smul.u32 2, %s20
          %s119 = ssub.s32 128, 128
          %120 = vsyncadd %s113, %s119
          %s121 = smul.addr %s22, 2
          %s122 = sadd.s32 %s21, %s121
          %s123 = smul.addr %s117, 2
          %s124 = sadd.s32 %s122, %s123
          %s125 = smul.addr %s124, 64
          %s126 = scalar_lea.hbm %s0, %s125
          %s127 = sshll.u32 %s116, 4
          %s128 = int_to_ptr.vmem [resolvable:$true] %s127
          %133 = dma.hbm_to_vmem [thread:$0]  %s126, 128, %s128, %s113, 128, 64, 4
        $region20: #{tpu_custom_call.1} parent=15 // pred_fallthru
          _
      $region16: #{tpu_custom_call.1} parent=5 // pred_fallthru
        _
      %p134 = scmp.le.s32.totalorder 1, %s13
      %p135 = scmp.lt.s32.totalorder %s13, 3
      %p136 = pnand %p134, %p135
      %p137 = pneg %p136
      // Predicated region
      $region21: #{tpu_custom_call.1} parent=5 // pred_check
        _
      $region22: #{tpu_custom_call.1} parent=5 // pred_check_branch
        %139 = sbr.rel (%p136) target = $region24
      $region23: #{tpu_custom_call.1} parent=5 // pred_region
        %s140 = ssub.s32 %s13, 1
        %s141 = sand.u32 %s49, 1
        %s142 = scalar_lea.sflag [#allocation3], %s141
        %s143 = sand.u32 %s49, 1
        %s144 = smul.addr %s143, 8
        %s145 = scalar_lea.vmem [#allocation2], %s144
        // Predicated region
        $region25: #{tpu_custom_call.1} parent=23 // pred_check
          %p146 = pneg %p62
        $region26: #{tpu_custom_call.1} parent=23 // pred_check_branch
          %148 = sbr.rel (%p146) target = $region28
        $region27: #{tpu_custom_call.1} parent=23 // pred_region
          %149 = dma.done %s142, 128
        $region28: #{tpu_custom_call.1} parent=23 // pred_fallthru
          _
        %s150 = sand.u32 %s49, 1
        %s151 = scalar_lea.sflag [#allocation3], %s150
        %s152 = sand.u32 %s49, 1
        %s153 = smul.addr %s152, 8
        %s154 = scalar_lea.vmem [#allocation2], %s153
        %p155 = pneg %p62
        %p156 = pneg %p59
        %p157 = pneg %p90
        %p158 = pneg %p87
        %s159 = sand.u32 %s77, 1
        %s160 = scalar_lea.sflag [#allocation4], %s159
        %s161 = sand.u32 %s77, 1
        %s162 = smul.addr %s161, 2
        %s163 = scalar_lea.vmem [#allocation5], %s162
        %s164 = smul.u32 2, %s23
        %s165 = smul.u32 2, %s23
        %v166 = vld [vmem:[%s145] sm:$0xf]
        %v167 = vld [vmem:[%s145 + $0x4] sm:$0xf]
        %vm168 = vcmask 1043456
        %v169 = vsel %vm168, %v166, 0.0
        %v170 = vrot.slane %v169, 4
        %v171 = vadd.f32 %v169, %v170
        %v172 = vrot.slane %v171, 2
        %v173 = vadd.f32 %v171, %v172
        %v174 = vrot.slane %v173, 1
        %v175 = vadd.f32 %v173, %v174
        %v176 = vsel %vm168, %v167, 0.0
        %v177 = vrot.slane %v176, 4
        %v178 = vadd.f32 %v176, %v177
        %v179 = vrot.slane %v178, 2
        %v180 = vadd.f32 %v178, %v179
        %v181 = vrot.slane %v180, 1
        %v182 = vadd.f32 %v180, %v181
        %v183 = vmul.f32 %v175, 0.25
        %v184 = vmul.f32 %v182, 0.25
        %185 = vst [vmem:[%s163] sm:$0x1] %v183
        %186 = vst [vmem:[%s163 + $0x1] sm:$0x1] %v184
        %s187 = sand.u32 %s77, 1
        %s188 = scalar_lea.sflag [#allocation4], %s187
        %s189 = sand.u32 %s77, 1
        %s190 = smul.addr %s189, 2
        %s191 = scalar_lea.vmem [#allocation5], %s190
        // Predicated region
        $region29: #{tpu_custom_call.1} parent=23 // pred_check
          %p192 = pneg %p87
        $region30: #{tpu_custom_call.1} parent=23 // pred_check_branch
          %194 = sbr.rel (%p192) target = $region32
        $region31: #{tpu_custom_call.1} parent=23 // pred_region
          %s195 = smul.u32 2, %s23
          %s197 = ssub.s32 32, 32
          %198 = vsyncadd %s188, %s197
          %s199 = smul.addr %s195, 2
          %s200 = sadd.s32 %s24, %s199
          %s201 = smul.addr %s200, 16
          %s202 = scalar_lea.hbm %s1, %s201
          %s203 = sshll.u32 %s191, 4
          %s204 = int_to_ptr.vmem [resolvable:$true] %s203
          %209 = dma.vmem_to_hbm [thread:$0]  %s204, 32, %s202, %s188, 16, 32, 1
        $region32: #{tpu_custom_call.1} parent=23 // pred_fallthru
          _
      $region24: #{tpu_custom_call.1} parent=5 // pred_fallthru
        _
      %p210 = scmp.le.s32.totalorder 2, %s13
      // Predicated region
      $region33: #{tpu_custom_call.1} parent=5 // pred_check
        %p211 = pneg %p210
      $region34: #{tpu_custom_call.1} parent=5 // pred_check_branch
        %213 = sbr.rel (%p211) target = $region36
      $region35: #{tpu_custom_call.1} parent=5 // pred_region
        %s214 = ssub.s32 %s13, 2
        // Predicated region
        $region37: #{tpu_custom_call.1} parent=35 // pred_check
          %p215 = pneg %p93
        $region38: #{tpu_custom_call.1} parent=35 // pred_check_branch
          %217 = sbr.rel (%p215) target = $region40
        $region39: #{tpu_custom_call.1} parent=35 // pred_region
          %s218 = sand.u32 %s78, 1
          %s219 = scalar_lea.sflag [#allocation4], %s218
          %s220 = sand.u32 %s78, 1
          %s221 = smul.addr %s220, 2
          %s222 = scalar_lea.vmem [#allocation5], %s221
          %223 = dma.done %s219, 32
        $region40: #{tpu_custom_call.1} parent=35 // pred_fallthru
          _
      $region36: #{tpu_custom_call.1} parent=5 // pred_fallthru
        _
    $region6: #{tpu_custom_call.1} parent=1 // loop_footer
      %s17 = sadd.s32 1, %s13
    $region7: #{tpu_custom_call.1} parent=1 // loop_footer_branch
      %12 = sbr.rel target = $region3
    $region8: #{tpu_custom_call.1} parent=1 // loop_exit
      _
    %224 = vsyncpa [#allocation3], 1
    %s225 = scalar_lea.sflag [#allocation3], 1
    %226 = vsyncpa %s225, 1
    %227 = vsyncpa [#allocation4], 1
    %s228 = scalar_lea.sflag [#allocation4], 1
    %229 = vsyncpa %s228, 1

</llo_original>
